<compile_context>
chip_gen: v7x
topology: tpu7x:2x2x1
jax: 0.10.0
libtpu: 0.0.40
codegen_flags: <defaults>
</compile_context>

<pallas_src>
import functools
import math

import jax
import jax.numpy as jnp
from jax.experimental import pallas as pl
from jax.experimental.pallas import tpu as pltpu

ALPHA = 0.5
BETA = 0.5
GAMMA = 1.0

LANE = 128       # lane width of a vreg
TM_MAX = 2048    # max sublane rows per tile -> 2048*128*4B = 1 MiB f32 block


def _partial_sums_kernel(x_ref, t_ref, o_ref, acc_ref, *,
                         tiles_per_core, total_tiles, n_valid, need_mask):
    """Accumulates per-core partial sums of (sigmoid(x)*t, sigmoid(x), t)."""
    i = pl.program_id(1)  # reduction axis (row tiles owned by this core)

    @pl.when(i == 0)
    def _init():
        acc_ref[...] = jnp.zeros_like(acc_ref)

    x = x_ref[...].astype(jnp.float32)
    t = t_ref[...].astype(jnp.float32)

    # sigmoid: the exp goes to the EUP; the f32 divide is fully hidden under
    # the DMA in this memory-bound kernel and keeps full f32 accuracy.
    s = 1.0 / (1.0 + jnp.exp(-x))

    if need_mask:
        # Mask out (a) Pallas padding of a partial last row-tile, (b) any
        # host-side pad to a multiple of LANE, and (c) a duplicated
        # (index-clamped) tile when the tile count is odd.
        tm, lane = s.shape
        c = pl.program_id(0)
        tile_id = c * tiles_per_core + i
        # NOTE: int32 global indices limit this path to < 2**31 elements.
        base = jnp.minimum(tile_id, total_tiles - 1) * (tm * lane)
        row_idx = jax.lax.broadcasted_iota(jnp.int32, (tm, lane), 0)
        lane_idx = jax.lax.broadcasted_iota(jnp.int32, (tm, lane), 1)
        idx = base + row_idx * lane + lane_idx
        valid = jnp.logical_and(idx < n_valid, tile_id < total_tiles)
        s = jnp.where(valid, s, 0.0)
        t = jnp.where(valid, t, 0.0)

    # Sublane-only reductions; cross-lane reduction is deferred to the wrapper.
    acc_ref[0:1, :] += jnp.sum(s * t, axis=0, keepdims=True)  # TP partial
    acc_ref[1:2, :] += jnp.sum(s, axis=0, keepdims=True)      # sum(sigmoid(x))
    acc_ref[2:3, :] += jnp.sum(t, axis=0, keepdims=True)      # sum(targets)

    @pl.when(i == pl.num_programs(1) - 1)
    def _finalize():
        o_ref[0] = acc_ref[...]


def focal_tversky_loss(inputs, targets, smooth=1.0, alpha=ALPHA, beta=BETA,
                       gamma=GAMMA):
    n = int(math.prod(inputs.shape))

    x = jnp.reshape(inputs, (-1,))
    t = jnp.reshape(targets, (-1,))

    if n % LANE != 0:
        # Rare path: pad the flat arrays up to a lane multiple (one copy).
        # Padded elements are excluded in-kernel by the global-index mask.
        pad = LANE - (n % LANE)
        x = jnp.pad(x, (0, pad))
        t = jnp.pad(t, (0, pad))

    rows = x.shape[0] // LANE
    x2 = x.reshape(rows, LANE)
    t2 = t.reshape(rows, LANE)

    # Tile / grid geometry (all static Python ints).
    tm = rows if rows < TM_MAX else TM_MAX          # full dim or multiple of 8
    total_tiles = -(-rows // tm)
    nc = 2 if total_tiles >= 2 else 1               # outer "parallel" axis (v7x)
    tpc = -(-total_tiles // nc)                     # tiles per core
    covered = nc * tpc * tm * LANE
    need_mask = covered != n

    def in_map(c, i):
        tile_id = c * tpc + i
        if nc * tpc != total_tiles:
            # Clamp the (fully masked) duplicate tile so the DMA stays in bounds.
            tile_id = jnp.minimum(tile_id, total_tiles - 1)
        return (tile_id, 0)

    kernel = functools.partial(
        _partial_sums_kernel,
        tiles_per_core=tpc,
        total_tiles=total_tiles,
        n_valid=n,
        need_mask=need_mask)

    parts = pl.pallas_call(
        kernel,
        out_shape=jax.ShapeDtypeStruct((nc, 3, LANE), jnp.float32),
        grid_spec=pltpu.PrefetchScalarGridSpec(
            num_scalar_prefetch=0,
            grid=(nc, tpc),
            in_specs=[
                pl.BlockSpec((tm, LANE), in_map),
                pl.BlockSpec((tm, LANE), in_map),
            ],
            out_specs=pl.BlockSpec((1, 3, LANE), lambda c, i: (c, 0, 0)),
            scratch_shapes=[pltpu.VMEM((3, LANE), jnp.float32)],
        ),
        compiler_params=pltpu.CompilerParams(
            dimension_semantics=("parallel", "arbitrary")),
    )(x2, t2)

    # Tiny scalar epilogue (cross-lane / cross-core reduce + Tversky formula).
    tp = jnp.sum(parts[:, 0, :])
    sum_s = jnp.sum(parts[:, 1, :])
    sum_t = jnp.sum(parts[:, 2, :])
    fp = sum_s - tp
    fn = sum_t - tp
    tversky = (tp + smooth) / (tp + alpha * fp + beta * fn + smooth)
    return jnp.maximum(1.0 - tversky, 0.0) ** gamma


def _reference_loss(inputs, targets, smooth=1.0, alpha=ALPHA, beta=BETA,
                    gamma=GAMMA):
    x = jax.nn.sigmoid(inputs.astype(jnp.float32)).reshape(-1)
    t = targets.astype(jnp.float32).reshape(-1)
    tp = jnp.sum(x * t)
    fp = jnp.sum((1.0 - t) * x)
    fn = jnp.sum(t * (1.0 - x))
    tversky = (tp + smooth) / (tp + alpha * fp + beta * fn + smooth)
    return (1.0 - tversky) ** gamma


if __name__ == "__main__":
    key = jax.random.PRNGKey(0)
    k_in, k_tg = jax.random.split(key)

    # NCHW logits and binary targets, matching the PyTorch module's usage.
    inputs = jax.random.normal(k_in, (2, 4, 16, 16), dtype=jnp.float32)
    targets = (jax.random.uniform(k_tg, (2, 4, 16, 16)) > 0.5).astype(jnp.float32)

    loss = jax.block_until_ready(focal_tversky_loss(inputs, targets))
    ref = jax.block_until_ready(_reference_loss(inputs, targets))

    assert jnp.allclose(loss, ref, atol=1e-4, rtol=1e-4), (loss, ref)
    print("KERNEL_OK")
</pallas_src>

<mosaic_0001>
module attributes {stable_mosaic.version = 11 : i64} {
  func.func @_partial_sums_kernel(%arg0: i32, %arg1: i32, %arg2: memref<16x128xf32, #tpu.memory_space<vmem>>, %arg3: memref<16x128xf32, #tpu.memory_space<vmem>>, %arg4: memref<1x3x128xf32, #tpu.memory_space<vmem>>, %arg5: memref<3x128xf32, #tpu.memory_space<vmem>>) attributes {dimension_semantics = [#tpu.dimension_semantics<parallel>, #tpu.dimension_semantics<arbitrary>], iteration_bounds = array<i64: 1, 1>, scalar_prefetch = 0 : i64, scratch_operands = 1 : i64, tpu.core_type = #tpu.core_type<tc>, window_params = [{transform_indices = @transform_0, window_bounds = array<i64: 16, 128>}, {transform_indices = @transform_1, window_bounds = array<i64: 16, 128>}, {transform_indices = @transform_2, window_bounds = array<i64: 1, 3, 128>}]} {
    %c0_i32 = arith.constant 0 : i32
    %0 = arith.cmpi eq, %arg1, %c0_i32 : i32
    %1 = arith.extui %0 : i1 to i32
    %c0_i32_0 = arith.constant 0 : i32
    %2 = arith.cmpi ne, %1, %c0_i32_0 : i32
    scf.if %2 {
      %cst_21 = arith.constant 0.000000e+00 : f32
      %31 = vector.broadcast %cst_21 : f32 to vector<3x128xf32>
      %c0_22 = arith.constant 0 : index
      %c0_23 = arith.constant 0 : index
      %32 = vector.load %arg5[%c0_22, %c0_23] : memref<3x128xf32, #tpu.memory_space<vmem>>, vector<3x128xf32>
      tpu.vector_store %arg5[%c0_22, %c0_23], %31 {strides = array<i32>} : memref<3x128xf32, #tpu.memory_space<vmem>>, vector<3x128xf32>,
    } else {
    }
    %c0 = arith.constant 0 : index
    %c0_1 = arith.constant 0 : index
    %3 = vector.load %arg2[%c0, %c0_1] : memref<16x128xf32, #tpu.memory_space<vmem>>, vector<16x128xf32>
    %c0_2 = arith.constant 0 : index
    %c0_3 = arith.constant 0 : index
    %4 = vector.load %arg3[%c0_2, %c0_3] : memref<16x128xf32, #tpu.memory_space<vmem>>, vector<16x128xf32>
    %cst = arith.constant 0.000000e+00 : f32
    %5 = vector.broadcast %cst : f32 to vector<16x128xf32>
    %6 = arith.subf %5, %3 : vector<16x128xf32>
    %7 = math.exp %6 : vector<16x128xf32>
    %cst_4 = arith.constant 1.000000e+00 : f32
    %8 = vector.broadcast %cst_4 : f32 to vector<16x128xf32>
    %9 = arith.addf %8, %7 : vector<16x128xf32>
    %cst_5 = arith.constant 1.000000e+00 : f32
    %10 = vector.broadcast %cst_5 : f32 to vector<16x128xf32>
    %11 = arith.divf %10, %9 : vector<16x128xf32>
    %c0_6 = arith.constant 0 : index
    %c0_7 = arith.constant 0 : index
    %12 = vector.load %arg5[%c0_6, %c0_7] : memref<3x128xf32, #tpu.memory_space<vmem>>, vector<1x128xf32>
    %13 = arith.mulf %11, %4 : vector<16x128xf32>
    %cst_8 = arith.constant dense<0.000000e+00> : vector<128xf32>
    %14 = vector.multi_reduction <add>, %13, %cst_8 [0] : vector<16x128xf32> to vector<128xf32>
    %15 = vector.shape_cast %14 : vector<128xf32> to vector<1x128xf32>
    %16 = arith.addf %12, %15 : vector<1x128xf32>
    %c0_9 = arith.constant 0 : index
    %c0_10 = arith.constant 0 : index
    %17 = vector.load %arg5[%c0_9, %c0_10] : memref<3x128xf32, #tpu.memory_space<vmem>>, vector<1x128xf32>
    tpu.vector_store %arg5[%c0_9, %c0_10], %16 {strides = array<i32>} : memref<3x128xf32, #tpu.memory_space<vmem>>, vector<1x128xf32>,
    %c1 = arith.constant 1 : index
    %c0_11 = arith.constant 0 : index
    %18 = vector.load %arg5[%c1, %c0_11] : memref<3x128xf32, #tpu.memory_space<vmem>>, vector<1x128xf32>
    %cst_12 = arith.constant dense<0.000000e+00> : vector<128xf32>
    %19 = vector.multi_reduction <add>, %11, %cst_12 [0] : vector<16x128xf32> to vector<128xf32>
    %20 = vector.shape_cast %19 : vector<128xf32> to vector<1x128xf32>
    %21 = arith.addf %18, %20 : vector<1x128xf32>
    %c1_13 = arith.constant 1 : index
    %c0_14 = arith.constant 0 : index
    %22 = vector.load %arg5[%c1_13, %c0_14] : memref<3x128xf32, #tpu.memory_space<vmem>>, vector<1x128xf32>
    tpu.vector_store %arg5[%c1_13, %c0_14], %21 {strides = array<i32>} : memref<3x128xf32, #tpu.memory_space<vmem>>, vector<1x128xf32>,
    %c2 = arith.constant 2 : index
    %c0_15 = arith.constant 0 : index
    %23 = vector.load %arg5[%c2, %c0_15] : memref<3x128xf32, #tpu.memory_space<vmem>>, vector<1x128xf32>
    %cst_16 = arith.constant dense<0.000000e+00> : vector<128xf32>
    %24 = vector.multi_reduction <add>, %4, %cst_16 [0] : vector<16x128xf32> to vector<128xf32>
    %25 = vector.shape_cast %24 : vector<128xf32> to vector<1x128xf32>
    %26 = arith.addf %23, %25 : vector<1x128xf32>
    %c2_17 = arith.constant 2 : index
    %c0_18 = arith.constant 0 : index
    %27 = vector.load %arg5[%c2_17, %c0_18] : memref<3x128xf32, #tpu.memory_space<vmem>>, vector<1x128xf32>
    tpu.vector_store %arg5[%c2_17, %c0_18], %26 {strides = array<i32>} : memref<3x128xf32, #tpu.memory_space<vmem>>, vector<1x128xf32>,
    %c0_i32_19 = arith.constant 0 : i32
    %28 = arith.cmpi eq, %arg1, %c0_i32_19 : i32
    %29 = arith.extui %28 : i1 to i32
    %c0_i32_20 = arith.constant 0 : i32
    %30 = arith.cmpi ne, %29, %c0_i32_20 : i32
    scf.if %30 {
      %c0_21 = arith.constant 0 : index
      %c0_22 = arith.constant 0 : index
      %31 = vector.load %arg5[%c0_21, %c0_22] : memref<3x128xf32, #tpu.memory_space<vmem>>, vector<3x128xf32>
      %c0_23 = arith.constant 0 : index
      %c0_24 = arith.constant 0 : index
      %c0_25 = arith.constant 0 : index
      %32 = vector.load %arg4[%c0_23, %c0_24, %c0_25] : memref<1x3x128xf32, #tpu.memory_space<vmem>>, vector<1x3x128xf32>
      %33 = vector.shape_cast %32 : vector<1x3x128xf32> to vector<3x128xf32>
      %34 = vector.shape_cast %31 : vector<3x128xf32> to vector<1x3x128xf32>
      tpu.vector_store %arg4[%c0_23, %c0_24, %c0_25], %34 {strides = array<i32>} : memref<1x3x128xf32, #tpu.memory_space<vmem>>, vector<1x3x128xf32>,
    } else {
    }
    return
  }
  func.func @transform_0(%arg0: i32, %arg1: i32) -> (i32, i32) {
    %c1_i32 = arith.constant 1 : i32
    %0 = arith.muli %arg0, %c1_i32 : i32
    %1 = arith.addi %0, %arg1 : i32
    %c0_i32 = arith.constant 0 : i32
    %c0_i32_0 = arith.constant 0 : i32
    return %1, %c0_i32 : i32, i32
  }
  func.func @transform_1(%arg0: i32, %arg1: i32) -> (i32, i32) {
    %c1_i32 = arith.constant 1 : i32
    %0 = arith.muli %arg0, %c1_i32 : i32
    %1 = arith.addi %0, %arg1 : i32
    %c0_i32 = arith.constant 0 : i32
    %c0_i32_0 = arith.constant 0 : i32
    return %1, %c0_i32 : i32, i32
  }
  func.func @transform_2(%arg0: i32, %arg1: i32) -> (i32, i32, i32) {
    %c0_i32 = arith.constant 0 : i32
    %c0_i32_0 = arith.constant 0 : i32
    %c0_i32_1 = arith.constant 0 : i32
    return %arg0, %c0_i32, %c0_i32_0 : i32, i32, i32
  }
}

</mosaic_0001>

<llo_original>
// kernel: tpu_custom_call.1
$region0: #{tpu_custom_call.1}
  #allocation0 [shape = 'u32[]', space=smem, size = 0x4, offset = 0x4, fixed_abs, tag = 'smem constant byte address 0x4 - core index']
  #allocation1 [shape = 'u32[144,128]{1,0:T(1,128)}', space=vmem, size = 0x12000, scoped, tag = 'internal scratch']
  #allocation2 [shape = 'f32[3,128]{1,0:T(4,128)}', space=vmem, size = 0x800, scoped, tag = 'scratch operand']
  %s0 = inlined_call_operand.hbm [shape: f32[16,128], index: 0, kind: input, shape index: {}]
  %s1 = inlined_call_operand.hbm [shape: f32[16,128], index: 1, kind: input, shape index: {}]
  %s2 = inlined_call_operand.vmem [shape: f32[1,3,128], index: 2, kind: output, shape index: {}]
  %s3 = sld [smem:[#allocation0]]
  $region34: #{tpu_custom_call.1} parent=0
    _
  %s5 = ssub.s32 1, %s3
  %s6 = scalar_select 0, %s5, %s3
  $region1: #{tpu_custom_call.1} parent=0
    #allocation3 [shape = 'u8[8192]{0}', space=vmem, size = 0x2000, scoped, tag = 'input window, operand 0, single buffered']
    #allocation4 [shape = 's32[1]{0}', space=sflag, size = 0x4, scoped, tag = 'scoped memory for tpu_custom_call.1']
    #allocation5 [shape = 'u8[8192]{0}', space=vmem, size = 0x2000, scoped, tag = 'input window, operand 1, single buffered']
    #allocation6 [shape = 's32[1]{0}', space=sflag, size = 0x4, scoped, tag = 'scoped memory for tpu_custom_call.1']
    %7 = vsyncpa [#allocation4], 0
    %8 = vsyncpa [#allocation6], 0
    // Predicated region
    $region2: #{tpu_custom_call.1} parent=1 // pred_check
      _
    $region3: #{tpu_custom_call.1} parent=1 // pred_check_branch
      %10 = sbr.rel (0) target = $region5
    $region4: #{tpu_custom_call.1} parent=1 // pred_region
      %s11 = sadd.s32 0, 0
      %s12 = smul.u32 2, %s11
      %s14 = ssub.s32 256, 256
      %15 = vsyncadd [#allocation4], %s14
      %s16 = smul.addr %s12, 128
      %s17 = scalar_lea.hbm %s0, %s16
      %s18 = sshll.u32 [#allocation3], 4
      %s19 = int_to_ptr.vmem [resolvable:$true] %s18
      %24 = dma.hbm_to_vmem [thread:$0]  %s17, 256, %s19, [#allocation4], 128, 128, 8
    $region5: #{tpu_custom_call.1} parent=1 // pred_fallthru
      _
    // Predicated region
    $region6: #{tpu_custom_call.1} parent=1 // pred_check
      _
    $region7: #{tpu_custom_call.1} parent=1 // pred_check_branch
      %26 = sbr.rel (0) target = $region9
    $region8: #{tpu_custom_call.1} parent=1 // pred_region
      %s27 = sadd.s32 0, 0
      %s28 = smul.u32 2, %s27
      %s30 = ssub.s32 256, 256
      %31 = vsyncadd [#allocation6], %s30
      %s32 = smul.addr %s28, 128
      %s33 = scalar_lea.hbm %s1, %s32
      %s34 = sshll.u32 [#allocation5], 4
      %s35 = int_to_ptr.vmem [resolvable:$true] %s34
      %40 = dma.hbm_to_vmem [thread:$0]  %s33, 256, %s35, [#allocation6], 128, 128, 8
    $region9: #{tpu_custom_call.1} parent=1 // pred_fallthru
      _
    // Predicated region
    $region10: #{tpu_custom_call.1} parent=1 // pred_check
      _
    $region11: #{tpu_custom_call.1} parent=1 // pred_check_branch
      %42 = sbr.rel (0) target = $region13
    $region12: #{tpu_custom_call.1} parent=1 // pred_region
      %43 = dma.done [#allocation4], 256
    $region13: #{tpu_custom_call.1} parent=1 // pred_fallthru
      _
    // Predicated region
    $region14: #{tpu_custom_call.1} parent=1 // pred_check
      _
    $region15: #{tpu_custom_call.1} parent=1 // pred_check_branch
      %45 = sbr.rel (0) target = $region17
    $region16: #{tpu_custom_call.1} parent=1 // pred_region
      %46 = dma.done [#allocation6], 256
    $region17: #{tpu_custom_call.1} parent=1 // pred_fallthru
      _
    %s47 = sadd.s32 0, 0
    %s48 = smul.u32 2, %s47
    %s49 = sadd.s32 0, 0
    %s50 = smul.u32 2, %s49
    %p51 = scmp.eq.s32.totalorder 0, 0
    // Predicated region
    $region18: #{tpu_custom_call.1} parent=1 // pred_check
      %p52 = pneg %p51
    $region19: #{tpu_custom_call.1} parent=1 // pred_check_branch
      %54 = sbr.rel (%p52) target = $region21
    $region20: #{tpu_custom_call.1} parent=1 // pred_region
      %55 = vst [vmem:[#allocation2] sm:$0x7] 0.0
    $region21: #{tpu_custom_call.1} parent=1 // pred_fallthru
      _
    %v56 = vld [vmem:[#allocation3] sm:$0xff]
    %v57 = vld [vmem:[#allocation3 + $0x8] sm:$0xff]
    %v58 = vld [vmem:[#allocation5] sm:$0xff]
    %v59 = vld [vmem:[#allocation5 + $0x8] sm:$0xff]
    %v60 = vsub.f32 0.0, %v56
    %v61 = vsub.f32 0.0, %v57
    %v62 = vmul.f32 %v60, 1.442695
    %v63 = vpow.pop %v62
    %v64 = vmul.f32 %v61, 1.442695
    %v65 = vpow.pop %v64
    %v66 = vadd.f32 %v63, 1.0
    %v67 = vadd.f32 %v65, 1.0
    %v68 = vrcp.pop %v66
    %v69 = vmul.f32 1.0, %v68
    %v70 = vrcp.pop %v67
    %v71 = vmul.f32 1.0, %v70
    %v72 = vld [vmem:[#allocation2] sm:$0x1]
    %v73 = vmul.f32 %v69, %v58
    %v74 = vmul.f32 %v71, %v59
    %v75 = vadd.f32 %v73, %v74
    %v76 = vrot.slane %v75, 4
    %v77 = vadd.f32 %v75, %v76
    %v78 = vrot.slane %v77, 2
    %v79 = vadd.f32 %v77, %v78
    %v80 = vrot.slane %v79, 1
    %v81 = vadd.f32 %v79, %v80
    %v82 = vadd.f32 %v72, %v81
    %83 = vst [vmem:[#allocation2] sm:$0x1] %v82
    %v84 = vld [vmem:[#allocation2 + $0x1] sm:$0x1]
    %v85 = vadd.f32 %v69, %v71
    %v86 = vrot.slane %v85, 4
    %v87 = vadd.f32 %v85, %v86
    %v88 = vrot.slane %v87, 2
    %v89 = vadd.f32 %v87, %v88
    %v90 = vrot.slane %v89, 1
    %v91 = vadd.f32 %v89, %v90
    %v92 = vadd.f32 %v84, %v91
    %93 = vst [vmem:[#allocation2 + $0x1] sm:$0x1] %v92
    %v94 = vld [vmem:[#allocation2 + $0x2] sm:$0x1]
    %v95 = vadd.f32 %v58, %v59
    %v96 = vrot.slane %v95, 4
    %v97 = vadd.f32 %v95, %v96
    %v98 = vrot.slane %v97, 2
    %v99 = vadd.f32 %v97, %v98
    %v100 = vrot.slane %v99, 1
    %v101 = vadd.f32 %v99, %v100
    %v102 = vadd.f32 %v94, %v101
    %103 = vst [vmem:[#allocation2 + $0x2] sm:$0x1] %v102
    // Predicated region
    $region22: #{tpu_custom_call.1} parent=1 // pred_check
      %p104 = pneg %p51
    $region23: #{tpu_custom_call.1} parent=1 // pred_check_branch
      %106 = sbr.rel (%p104) target = $region25
    $region24: #{tpu_custom_call.1} parent=1 // pred_region
      %v107 = vld [vmem:[#allocation2] sm:$0x7]
      %108 = vst [vmem:[%s2] sm:$0x7] %v107
    $region25: #{tpu_custom_call.1} parent=1 // pred_fallthru
      _
    // Predicated region
    $region26: #{tpu_custom_call.1} parent=1 // pred_check
      _
    $region27: #{tpu_custom_call.1} parent=1 // pred_check_branch
      %110 = sbr.rel (0) target = $region29
    $region28: #{tpu_custom_call.1} parent=1 // pred_region
      _
    $region29: #{tpu_custom_call.1} parent=1 // pred_fallthru
      _
    // Predicated region
    $region30: #{tpu_custom_call.1} parent=1 // pred_check
      _
    $region31: #{tpu_custom_call.1} parent=1 // pred_check_branch
      %112 = sbr.rel (0) target = $region33
    $region32: #{tpu_custom_call.1} parent=1 // pred_region
      _
    $region33: #{tpu_custom_call.1} parent=1 // pred_fallthru
      _
    %113 = vsyncpa [#allocation4], 1
    %114 = vsyncpa [#allocation6], 1

</llo_original>
